<compile_context>
chip_gen: v5e
topology: v5e:2x2
jax: 0.10.0
libtpu: 0.0.40
codegen_flags: <defaults>
</compile_context>

<pallas_src>
import jax
import jax.numpy as jnp
from jax.experimental import pallas as pl
from jax.experimental.pallas import tpu as pltpu


def _cdiv(a, b):
    return (a + b - 1) // b


def _round_up(n, m):
    return _cdiv(n, m) * m


def actor_kernel(x_ref, w1_ref, b1_ref, w2_ref, b2_ref, w3_ref, b3_ref, mu_ref):
    # fc1 -> relu  (MXU dot, f32 accumulation; bias add / relu on the VPU in f32)
    h1 = jnp.dot(x_ref[...], w1_ref[...], preferred_element_type=jnp.float32)
    h1 = jnp.maximum(h1 + b1_ref[...], 0.0)
    # fc2 -> relu
    h2 = jnp.dot(h1.astype(w2_ref.dtype), w2_ref[...],
                 preferred_element_type=jnp.float32)
    h2 = jnp.maximum(h2 + b2_ref[...], 0.0)
    # mu_head -> 2 * tanh  (tanh goes to the EUP; store is a narrow masked vst)
    mu = jnp.dot(h2.astype(w3_ref.dtype), w3_ref[...],
                 preferred_element_type=jnp.float32)
    mu_ref[...] = (2.0 * jnp.tanh(mu + b3_ref[...])).astype(mu_ref.dtype)


def prepare_params(params, use_bf16=False):
    """One-time, call-invariant prep: dtype casts, 2-D biases, exp(log_std)."""
    w1, b1, w2, b2, w3, b3, log_std = params
    wdt = jnp.bfloat16 if use_bf16 else jnp.float32
    f32 = jnp.float32
    return (
        w1.astype(wdt), b1.reshape(1, -1).astype(f32),
        w2.astype(wdt), b2.reshape(1, -1).astype(f32),
        w3.astype(wdt), b3.reshape(1, -1).astype(f32),
        jnp.exp(log_std).reshape(1, -1).astype(f32),   # std row (x-independent)
    )


def actor_forward(x, prepared, block_rows=2048):
    """Actor forward pass; returns (mu, std) of the Normal distribution."""
    w1, b1, w2, b2, w3, b3, std_row = prepared
    B, D = x.shape
    H = w1.shape[1]
    A = w3.shape[1]

    # Batch tiling: n_tiles = ceil(B / block_rows); TB derived from B / n_tiles
    # (rounded to a sublane multiple of 8) so the last tile is never mostly
    # padded rows.  B > block_rows automatically gives >= 2 grid steps, which
    # lets the "parallel" axis shard across both v7x TensorCores.
    n_tiles = max(1, _cdiv(B, block_rows))
    TB = _round_up(_cdiv(B, n_tiles), 8)
    Bp = n_tiles * TB

    x = x.astype(w1.dtype)
    if Bp != B:
        x = jnp.pad(x, ((0, Bp - B), (0, 0)))  # row padding only; sliced off below

    def resident(shape):
        # Same block every grid step -> DMA'd once, stays resident in VMEM.
        return pl.BlockSpec(shape, lambda i: (0, 0))

    mu_p = pl.pallas_call(
        actor_kernel,
        out_shape=jax.ShapeDtypeStruct((Bp, A), jnp.float32),
        grid=(n_tiles,),
        in_specs=[
            # x streamed per batch tile; feature dim left at its natural width
            # (last block dim == full array dim is legal).
            pl.BlockSpec((TB, D), lambda i: (i, 0)),
            resident((D, H)), resident((1, H)),   # fc1 weight / bias
            resident((H, H)), resident((1, H)),   # fc2 weight / bias
            resident((H, A)), resident((1, A)),   # mu head weight / bias
        ],
        out_specs=pl.BlockSpec((TB, A), lambda i: (i, 0)),
        compiler_params=pltpu.CompilerParams(
            dimension_semantics=("parallel",)),
    )(x, w1, b1, w2, b2, w3, b3)

    mu = mu_p[:B]
    # std does not depend on x: broadcast the precomputed exp(log_std) row.
    std = jnp.broadcast_to(std_row, mu.shape)
    return mu, std


def init_actor_params(key, hidden_size, num_inputs1, num_inputs2):
    """Deterministic orthogonal init matching the PyTorch module's __init__."""
    k1, k2, k3 = jax.random.split(key, 3)
    ortho = jax.nn.initializers.orthogonal
    # PyTorch nn.Linear weight is [out, in]; we store [in, out] for x @ W.
    w1 = ortho(1.0)(k1, (num_inputs1, hidden_size), jnp.float32)
    b1 = jnp.zeros((hidden_size,), jnp.float32)
    w2 = ortho(1.0)(k2, (hidden_size, hidden_size), jnp.float32)
    b2 = jnp.zeros((hidden_size,), jnp.float32)
    w3 = ortho(0.01)(k3, (hidden_size, num_inputs2), jnp.float32)
    b3 = jnp.zeros((num_inputs2,), jnp.float32)
    log_std = jnp.zeros((num_inputs2,), jnp.float32)
    return (w1, b1, w2, b2, w3, b3, log_std)


def _reference(x, params):
    w1, b1, w2, b2, w3, b3, log_std = params
    h1 = jnp.maximum(x @ w1 + b1.reshape(1, -1), 0.0)
    h2 = jnp.maximum(h1 @ w2 + b2.reshape(1, -1), 0.0)
    mu = 2.0 * jnp.tanh(h2 @ w3 + b3.reshape(1, -1))
    std = jnp.broadcast_to(jnp.exp(log_std).reshape(1, -1), mu.shape)
    return mu, std


if __name__ == "__main__":
    hidden_size = 32
    num_inputs1 = 16   # observation dim
    num_inputs2 = 4    # action dim

    key = jax.random.PRNGKey(0)
    pkey, xkey1, xkey2 = jax.random.split(key, 3)
    params = init_actor_params(pkey, hidden_size, num_inputs1, num_inputs2)
    prepared = prepare_params(params)  # f32 path (use_bf16=True also available)

    # Case 1: small batch (single grid step).
    x_small = jax.random.normal(xkey1, (8, num_inputs1), jnp.float32)
    mu, std = actor_forward(x_small, prepared)
    jax.block_until_ready((mu, std))
    mu_ref, std_ref = _reference(x_small, params)
    assert mu.shape == (8, num_inputs2) and std.shape == (8, num_inputs2)
    assert jnp.allclose(mu, mu_ref, atol=1e-5), "mu mismatch (small batch)"
    assert jnp.allclose(std, std_ref, atol=1e-6), "std mismatch (small batch)"

    # Case 2: multi-tile grid with a padded last tile (exercises streaming path).
    x_big = jax.random.normal(xkey2, (300, num_inputs1), jnp.float32)
    mu_b, std_b = actor_forward(x_big, prepared, block_rows=128)
    jax.block_until_ready((mu_b, std_b))
    mu_bref, std_bref = _reference(x_big, params)
    assert mu_b.shape == (300, num_inputs2)
    assert jnp.allclose(mu_b, mu_bref, atol=1e-5), "mu mismatch (multi-tile)"
    assert jnp.allclose(std_b, std_bref, atol=1e-6), "std mismatch (multi-tile)"

    print("KERNEL_OK")
</pallas_src>

<mosaic_0001>
module attributes {stable_mosaic.version = 11 : i64} {
  func.func @actor_kernel(%arg0: i32, %arg1: memref<8x16xf32, #tpu.memory_space<vmem>>, %arg2: memref<16x32xf32, #tpu.memory_space<vmem>>, %arg3: memref<1x32xf32, #tpu.memory_space<vmem>>, %arg4: memref<32x32xf32, #tpu.memory_space<vmem>>, %arg5: memref<1x32xf32, #tpu.memory_space<vmem>>, %arg6: memref<32x4xf32, #tpu.memory_space<vmem>>, %arg7: memref<1x4xf32, #tpu.memory_space<vmem>>, %arg8: memref<8x4xf32, #tpu.memory_space<vmem>>) attributes {dimension_semantics = [#tpu.dimension_semantics<parallel>], iteration_bounds = array<i64: 1>, scalar_prefetch = 0 : i64, scratch_operands = 0 : i64, tpu.core_type = #tpu.core_type<tc>, window_params = [{transform_indices = @transform_0, window_bounds = array<i64: 8, 16>}, {pipeline_mode = #tpu.pipeline_mode<synchronous>, transform_indices = @transform_1, window_bounds = array<i64: 16, 32>}, {pipeline_mode = #tpu.pipeline_mode<synchronous>, transform_indices = @transform_2, window_bounds = array<i64: 1, 32>}, {pipeline_mode = #tpu.pipeline_mode<synchronous>, transform_indices = @transform_3, window_bounds = array<i64: 32, 32>}, {pipeline_mode = #tpu.pipeline_mode<synchronous>, transform_indices = @transform_4, window_bounds = array<i64: 1, 32>}, {pipeline_mode = #tpu.pipeline_mode<synchronous>, transform_indices = @transform_5, window_bounds = array<i64: 32, 4>}, {pipeline_mode = #tpu.pipeline_mode<synchronous>, transform_indices = @transform_6, window_bounds = array<i64: 1, 4>}, {transform_indices = @transform_7, window_bounds = array<i64: 8, 4>}]} {
    %c0 = arith.constant 0 : index
    %c0_0 = arith.constant 0 : index
    %0 = vector.load %arg1[%c0, %c0_0] : memref<8x16xf32, #tpu.memory_space<vmem>>, vector<8x16xf32>
    %c0_1 = arith.constant 0 : index
    %c0_2 = arith.constant 0 : index
    %1 = vector.load %arg2[%c0_1, %c0_2] : memref<16x32xf32, #tpu.memory_space<vmem>>, vector<16x32xf32>
    %cst = arith.constant dense<0.000000e+00> : vector<8x32xf32>
    %2 = tpu.matmul %0, %1, %cst {dimension_numbers = #tpu.dot_dimension_numbers<[1], [0], [0], [1], [0, 0, 1, 1], [], []>} : vector<8x16xf32>, vector<16x32xf32>, vector<8x32xf32> -> vector<8x32xf32>
    %c0_3 = arith.constant 0 : index
    %c0_4 = arith.constant 0 : index
    %3 = vector.load %arg3[%c0_3, %c0_4] : memref<1x32xf32, #tpu.memory_space<vmem>>, vector<1x32xf32>
    %4 = vector.broadcast %3 : vector<1x32xf32> to vector<8x32xf32>
    %5 = arith.addf %2, %4 : vector<8x32xf32>
    %cst_5 = arith.constant 0.000000e+00 : f32
    %6 = vector.broadcast %cst_5 : f32 to vector<8x32xf32>
    %7 = arith.maximumf %5, %6 : vector<8x32xf32>
    %c0_6 = arith.constant 0 : index
    %c0_7 = arith.constant 0 : index
    %8 = vector.load %arg4[%c0_6, %c0_7] : memref<32x32xf32, #tpu.memory_space<vmem>>, vector<32x32xf32>
    %cst_8 = arith.constant dense<0.000000e+00> : vector<8x32xf32>
    %9 = tpu.matmul %7, %8, %cst_8 {dimension_numbers = #tpu.dot_dimension_numbers<[1], [0], [0], [1], [0, 0, 1, 1], [], []>} : vector<8x32xf32>, vector<32x32xf32>, vector<8x32xf32> -> vector<8x32xf32>
    %c0_9 = arith.constant 0 : index
    %c0_10 = arith.constant 0 : index
    %10 = vector.load %arg5[%c0_9, %c0_10] : memref<1x32xf32, #tpu.memory_space<vmem>>, vector<1x32xf32>
    %11 = vector.broadcast %10 : vector<1x32xf32> to vector<8x32xf32>
    %12 = arith.addf %9, %11 : vector<8x32xf32>
    %cst_11 = arith.constant 0.000000e+00 : f32
    %13 = vector.broadcast %cst_11 : f32 to vector<8x32xf32>
    %14 = arith.maximumf %12, %13 : vector<8x32xf32>
    %c0_12 = arith.constant 0 : index
    %c0_13 = arith.constant 0 : index
    %15 = vector.load %arg6[%c0_12, %c0_13] : memref<32x4xf32, #tpu.memory_space<vmem>>, vector<32x4xf32>
    %cst_14 = arith.constant dense<0.000000e+00> : vector<8x4xf32>
    %16 = tpu.matmul %14, %15, %cst_14 {dimension_numbers = #tpu.dot_dimension_numbers<[1], [0], [0], [1], [0, 0, 1, 1], [], []>} : vector<8x32xf32>, vector<32x4xf32>, vector<8x4xf32> -> vector<8x4xf32>
    %c0_15 = arith.constant 0 : index
    %c0_16 = arith.constant 0 : index
    %17 = vector.load %arg7[%c0_15, %c0_16] : memref<1x4xf32, #tpu.memory_space<vmem>>, vector<1x4xf32>
    %18 = vector.broadcast %17 : vector<1x4xf32> to vector<8x4xf32>
    %19 = arith.addf %16, %18 : vector<8x4xf32>
    %20 = math.tanh %19 : vector<8x4xf32>
    %cst_17 = arith.constant 2.000000e+00 : f32
    %21 = vector.broadcast %cst_17 : f32 to vector<8x4xf32>
    %22 = arith.mulf %21, %20 : vector<8x4xf32>
    %c0_18 = arith.constant 0 : index
    %c0_19 = arith.constant 0 : index
    %23 = vector.load %arg8[%c0_18, %c0_19] : memref<8x4xf32, #tpu.memory_space<vmem>>, vector<8x4xf32>
    tpu.vector_store %arg8[%c0_18, %c0_19], %22 {strides = array<i32>} : memref<8x4xf32, #tpu.memory_space<vmem>>, vector<8x4xf32>,
    return
  }
  func.func @transform_0(%arg0: i32) -> (i32, i32) {
    %c0_i32 = arith.constant 0 : i32
    %c0_i32_0 = arith.constant 0 : i32
    return %arg0, %c0_i32 : i32, i32
  }
  func.func @transform_1(%arg0: i32) -> (i32, i32) {
    %c0_i32 = arith.constant 0 : i32
    %c0_i32_0 = arith.constant 0 : i32
    %c0_i32_1 = arith.constant 0 : i32
    return %c0_i32, %c0_i32_0 : i32, i32
  }
  func.func @transform_2(%arg0: i32) -> (i32, i32) {
    %c0_i32 = arith.constant 0 : i32
    %c0_i32_0 = arith.constant 0 : i32
    %c0_i32_1 = arith.constant 0 : i32
    return %c0_i32, %c0_i32_0 : i32, i32
  }
  func.func @transform_3(%arg0: i32) -> (i32, i32) {
    %c0_i32 = arith.constant 0 : i32
    %c0_i32_0 = arith.constant 0 : i32
    %c0_i32_1 = arith.constant 0 : i32
    return %c0_i32, %c0_i32_0 : i32, i32
  }
  func.func @transform_4(%arg0: i32) -> (i32, i32) {
    %c0_i32 = arith.constant 0 : i32
    %c0_i32_0 = arith.constant 0 : i32
    %c0_i32_1 = arith.constant 0 : i32
    return %c0_i32, %c0_i32_0 : i32, i32
  }
  func.func @transform_5(%arg0: i32) -> (i32, i32) {
    %c0_i32 = arith.constant 0 : i32
    %c0_i32_0 = arith.constant 0 : i32
    %c0_i32_1 = arith.constant 0 : i32
    return %c0_i32, %c0_i32_0 : i32, i32
  }
  func.func @transform_6(%arg0: i32) -> (i32, i32) {
    %c0_i32 = arith.constant 0 : i32
    %c0_i32_0 = arith.constant 0 : i32
    %c0_i32_1 = arith.constant 0 : i32
    return %c0_i32, %c0_i32_0 : i32, i32
  }
  func.func @transform_7(%arg0: i32) -> (i32, i32) {
    %c0_i32 = arith.constant 0 : i32
    %c0_i32_0 = arith.constant 0 : i32
    return %arg0, %c0_i32 : i32, i32
  }
}

</mosaic_0001>

<llo_original>
// kernel: tpu_custom_call.1
$region0: #{tpu_custom_call.1}
  #allocation0 [shape = 'u32[]', space=smem, size = 0x4, offset = 0x4, fixed_abs, tag = 'smem constant byte address 0x4 - core index']
  #allocation1 [shape = 'u32[72,128]{1,0:T(1,128)}', space=vmem, size = 0x9000, scoped, tag = 'internal scratch']
  %s0 = inlined_call_operand.hbm [shape: f32[8,16], index: 0, kind: input, shape index: {}]
  %s1 = inlined_call_operand.hbm [shape: f32[16,32], index: 1, kind: input, shape index: {}]
  %s2 = inlined_call_operand.vmem [shape: f32[1,32], index: 2, kind: input, shape index: {}]
  %s3 = inlined_call_operand.vmem [shape: f32[32,32], index: 3, kind: input, shape index: {}]
  %s4 = inlined_call_operand.vmem [shape: f32[1,32], index: 4, kind: input, shape index: {}]
  %s5 = inlined_call_operand.vmem [shape: f32[32,4], index: 5, kind: input, shape index: {}]
  %s6 = inlined_call_operand.vmem [shape: f32[1,4], index: 6, kind: input, shape index: {}]
  %s7 = inlined_call_operand.vmem [shape: f32[8,4], index: 7, kind: output, shape index: {}]
  %s8 = sld [smem:[#allocation0]]
  $region46: #{tpu_custom_call.1} parent=0
    _
  %s10 = ssub.s32 1, %s8
  %s11 = scalar_select 0, %s10, %s8
  $region1: #{tpu_custom_call.1} parent=0
    #allocation2 [shape = 'u8[4096]{0}', space=vmem, size = 0x1000, scoped, tag = 'input window, operand 0, single buffered']
    #allocation3 [shape = 's32[1]{0}', space=sflag, size = 0x4, scoped, tag = 'scoped memory for tpu_custom_call.1']
    #allocation4 [shape = 'u8[8192]{0}', space=vmem, size = 0x2000, scoped, tag = 'input window, operand 1, single buffered']
    #allocation5 [shape = 's32[1]{0}', space=sflag, size = 0x4, scoped, tag = 'scoped memory for tpu_custom_call.1']
    %12 = vsyncpa [#allocation3], 0
    %13 = vsyncpa [#allocation5], 0
    // Predicated region
    $region2: #{tpu_custom_call.1} parent=1 // pred_check
      _
    $region3: #{tpu_custom_call.1} parent=1 // pred_check_branch
      %15 = sbr.rel (0) target = $region5
    $region4: #{tpu_custom_call.1} parent=1 // pred_region
      %17 = vsyncadd [#allocation3], 0
      %s19 = sshll.u32 %s0, 4
      %s20 = int_to_ptr.hbm [resolvable:$true] %s19
      %s21 = sshll.u32 [#allocation2], 4
      %s22 = int_to_ptr.vmem [resolvable:$true] %s21
      %24 = dma.hbm_to_vmem [thread:$0]  %s20, 128, %s22, [#allocation3]
    $region5: #{tpu_custom_call.1} parent=1 // pred_fallthru
      _
    // Predicated region
    $region6: #{tpu_custom_call.1} parent=1 // pred_check
      _
    $region7: #{tpu_custom_call.1} parent=1 // pred_check_branch
      %26 = sbr.rel (0) target = $region9
    $region8: #{tpu_custom_call.1} parent=1 // pred_region
      %28 = vsyncadd [#allocation5], 0
      %s29 = sshll.u32 %s1, 4
      %s30 = int_to_ptr.hbm [resolvable:$true] %s29
      %s31 = sshll.u32 [#allocation4], 4
      %s32 = int_to_ptr.vmem [resolvable:$true] %s31
      %37 = dma.hbm_to_vmem [thread:$0]  %s30, 256, %s32, [#allocation5], 128, 128, 8
    $region9: #{tpu_custom_call.1} parent=1 // pred_fallthru
      _
    // Predicated region
    $region10: #{tpu_custom_call.1} parent=1 // pred_check
      _
    $region11: #{tpu_custom_call.1} parent=1 // pred_check_branch
      %39 = sbr.rel (0) target = $region13
    $region12: #{tpu_custom_call.1} parent=1 // pred_region
      _
    $region13: #{tpu_custom_call.1} parent=1 // pred_fallthru
      _
    // Predicated region
    $region14: #{tpu_custom_call.1} parent=1 // pred_check
      _
    $region15: #{tpu_custom_call.1} parent=1 // pred_check_branch
      %41 = sbr.rel (0) target = $region17
    $region16: #{tpu_custom_call.1} parent=1 // pred_region
      _
    $region17: #{tpu_custom_call.1} parent=1 // pred_fallthru
      _
    // Predicated region
    $region18: #{tpu_custom_call.1} parent=1 // pred_check
      _
    $region19: #{tpu_custom_call.1} parent=1 // pred_check_branch
      %43 = sbr.rel (0) target = $region21
    $region20: #{tpu_custom_call.1} parent=1 // pred_region
      _
    $region21: #{tpu_custom_call.1} parent=1 // pred_fallthru
      _
    // Predicated region
    $region22: #{tpu_custom_call.1} parent=1 // pred_check
      _
    $region23: #{tpu_custom_call.1} parent=1 // pred_check_branch
      %45 = sbr.rel (0) target = $region25
    $region24: #{tpu_custom_call.1} parent=1 // pred_region
      _
    $region25: #{tpu_custom_call.1} parent=1 // pred_fallthru
      _
    // Predicated region
    $region26: #{tpu_custom_call.1} parent=1 // pred_check
      _
    $region27: #{tpu_custom_call.1} parent=1 // pred_check_branch
      %47 = sbr.rel (0) target = $region29
    $region28: #{tpu_custom_call.1} parent=1 // pred_region
      _
    $region29: #{tpu_custom_call.1} parent=1 // pred_fallthru
      _
    // Predicated region
    $region30: #{tpu_custom_call.1} parent=1 // pred_check
      _
    $region31: #{tpu_custom_call.1} parent=1 // pred_check_branch
      %49 = sbr.rel (0) target = $region33
    $region32: #{tpu_custom_call.1} parent=1 // pred_region
      %51 = dma.done [#allocation3], 128
    $region33: #{tpu_custom_call.1} parent=1 // pred_fallthru
      _
    // Predicated region
    $region34: #{tpu_custom_call.1} parent=1 // pred_check
      _
    $region35: #{tpu_custom_call.1} parent=1 // pred_check_branch
      %53 = sbr.rel (0) target = $region37
    $region36: #{tpu_custom_call.1} parent=1 // pred_region
      %55 = dma.done [#allocation5], 256
    $region37: #{tpu_custom_call.1} parent=1 // pred_fallthru
      _
    %v56 = vld [vmem:[#allocation2] sm:$0xff]
    %v57 = vld [vmem:[#allocation4] sm:$0xff]
    %v58 = vld [vmem:[#allocation4 + $0x8] sm:$0xff]
    %v59 = vld [vmem:[%s2] sm:$0x1]
    %v61 = vperm.slane %v59, 0
    %vm63 = vcmask 130048
    %v65 = vsel %vm63, %v56, 0
    %67 = vmatpush.msra.mxu0 0.0
    %68 = vmatpush.msra.mxu0 0.0
    %69 = vmatpush.msra.mxu0 0.0
    %70 = vmatpush.msra.mxu0 0.0
    %71 = vmatpush.msra.mxu0 0.0
    %72 = vmatpush.msra.mxu0 0.0
    %73 = vmatpush.msra.mxu0 0.0
    %74 = vmatpush.msra.mxu0 0.0
    %75 = vmatpush.msra.mxu0 0.0
    %76 = vmatpush.msra.mxu0 0.0
    %77 = vmatpush.msra.mxu0 0.0
    %78 = vmatpush.msra.mxu0 0.0
    %79 = vmatpush.msra.mxu0 0.0
    %80 = vmatpush.msra.mxu0 0.0
    %81 = vmatpush.msra.mxu0 %v58
    %82 = vmatpush.msra.mxu0 %v57
    %83 = vmatmul.f32.gmra.mxu0 %v65
    %v84 = vpop.f32.mrf.mxu0
    %v85 = vadd.f32 %v61, %v84
    %86 = vdwg.mxu0
    %v87 = vmax.f32 %v85, 0.0
    %v88 = vld [vmem:[%s3] sm:$0xff]
    %v89 = vld [vmem:[%s3 + $0x8] sm:$0xff]
    %v90 = vld [vmem:[%s3 + $0x10] sm:$0xff]
    %v91 = vld [vmem:[%s3 + $0x18] sm:$0xff]
    %v92 = vld [vmem:[%s4] sm:$0x1]
    %v94 = vperm.slane %v92, 0
    %vm96 = vcmask 261120
    %v98 = vsel %vm96, %v87, 0
    %100 = vmatpush.msra.mxu0 0.0
    %101 = vmatpush.msra.mxu0 0.0
    %102 = vmatpush.msra.mxu0 0.0
    %103 = vmatpush.msra.mxu0 0.0
    %104 = vmatpush.msra.mxu0 0.0
    %105 = vmatpush.msra.mxu0 0.0
    %106 = vmatpush.msra.mxu0 0.0
    %107 = vmatpush.msra.mxu0 0.0
    %108 = vmatpush.msra.mxu0 0.0
    %109 = vmatpush.msra.mxu0 0.0
    %110 = vmatpush.msra.mxu0 0.0
    %111 = vmatpush.msra.mxu0 0.0
    %112 = vmatpush.msra.mxu0 %v91
    %113 = vmatpush.msra.mxu0 %v90
    %114 = vmatpush.msra.mxu0 %v89
    %115 = vmatpush.msra.mxu0 %v88
    %116 = vmatmul.f32.gmra.mxu0 %v98
    %v117 = vpop.f32.mrf.mxu0
    %v118 = vadd.f32 %v94, %v117
    %119 = vdwg.mxu0
    %v120 = vmax.f32 %v118, 0.0
    %v121 = vld [vmem:[%s5] sm:$0xff]
    %v122 = vld [vmem:[%s5 + $0x8] sm:$0xff]
    %v123 = vld [vmem:[%s5 + $0x10] sm:$0xff]
    %v124 = vld [vmem:[%s5 + $0x18] sm:$0xff]
    %v125 = vld [vmem:[%s6] sm:$0x1]
    %v127 = vperm.slane %v125, 0
    %v130 = vsel %vm96, %v120, 0
    %132 = vmatpush.msra.mxu0 0.0
    %133 = vmatpush.msra.mxu0 0.0
    %134 = vmatpush.msra.mxu0 0.0
    %135 = vmatpush.msra.mxu0 0.0
    %136 = vmatpush.msra.mxu0 0.0
    %137 = vmatpush.msra.mxu0 0.0
    %138 = vmatpush.msra.mxu0 0.0
    %139 = vmatpush.msra.mxu0 0.0
    %140 = vmatpush.msra.mxu0 0.0
    %141 = vmatpush.msra.mxu0 0.0
    %142 = vmatpush.msra.mxu0 0.0
    %143 = vmatpush.msra.mxu0 0.0
    %144 = vmatpush.msra.mxu0 %v124
    %145 = vmatpush.msra.mxu0 %v123
    %146 = vmatpush.msra.mxu0 %v122
    %147 = vmatpush.msra.mxu0 %v121
    %148 = vmatmul.f32.gmra.mxu0 %v130
    %v149 = vpop.f32.mrf.mxu0
    %v150 = vadd.f32 %v127, %v149
    %151 = vdwg.mxu0
    %v152 = vtanh.pop %v150
    %v153 = vmul.f32 %v152, 2.0
    %vm154 = vcmask 31744
    %155 = vst.msk [vmem:[%s7] sm:$0xff] %vm154, %v153
    // Predicated region
    $region38: #{tpu_custom_call.1} parent=1 // pred_check
      _
    $region39: #{tpu_custom_call.1} parent=1 // pred_check_branch
      %157 = sbr.rel (0) target = $region41
    $region40: #{tpu_custom_call.1} parent=1 // pred_region
      _
    $region41: #{tpu_custom_call.1} parent=1 // pred_fallthru
      _
    // Predicated region
    $region42: #{tpu_custom_call.1} parent=1 // pred_check
      _
    $region43: #{tpu_custom_call.1} parent=1 // pred_check_branch
      %159 = sbr.rel (0) target = $region45
    $region44: #{tpu_custom_call.1} parent=1 // pred_region
      _
    $region45: #{tpu_custom_call.1} parent=1 // pred_fallthru
      _
    %160 = vsyncpa [#allocation3], 1
    %161 = vsyncpa [#allocation5], 1

</llo_original>
